<compile_context>
chip_gen: v7x
topology: tpu7x:2x2x1
jax: 0.10.0
libtpu: 0.0.40
codegen_flags: <defaults>
</compile_context>

<pallas_src>
import functools

import jax
import jax.numpy as jnp
from jax.experimental import pallas as pl
from jax.experimental.pallas import tpu as pltpu


def _round_up(x, m):
    return ((x + m - 1) // m) * m


def _dgp_stack_kernel(f0_ref, w_ref, b_ref, eps_ref,
                      f_all_ref, mean_all_ref, covar_all_ref):
    """Full DGP layer stack for one row tile.

    f0_ref:        (TILE_M, D)       initial function values (samples x batch rows)
    w_ref:         (L, D, 2*D)       per-layer [W_mean | W_var], VMEM-resident
    b_ref:         (L, 1, 2*D)       per-layer [b_mean | b_var], VMEM-resident
    eps_ref:       (L, TILE_M, D)    fixed standard-normal draws per layer
    f_all_ref:     (L, TILE_M, D)    f after each layer
    mean_all_ref:  (L, TILE_M, D)    mean of each layer
    covar_all_ref: (L, TILE_M, D)    diagonal covariance of each layer
    """
    n_layers = w_ref.shape[0]
    d = f0_ref.shape[-1]

    f = f0_ref[...]                                       # (TILE_M, D) lives in VMEM/vregs
    for l in range(n_layers):                             # static unroll over layers
        # One fused MXU matmul produces both mean and raw-variance columns.
        z = jnp.dot(f, w_ref[l], preferred_element_type=jnp.float32)
        z = z + b_ref[l]                                  # broadcast (1, 2D)
        mean = z[:, :d]
        raw = z[:, d:]
        # single-branch numerically stable softplus (half the EUP work)
        covar = jnp.maximum(raw, 0.0) + jnp.log1p(jnp.exp(-jnp.abs(raw)))
        f = mean + jnp.sqrt(covar) * eps_ref[l]
        mean_all_ref[l] = mean
        covar_all_ref[l] = covar
        f_all_ref[l] = f


@functools.partial(jax.jit, static_argnames=("tile_m",))
def dgp_stack(f0, w_all, b_all, eps, *, tile_m=512):
    """Run the fused DGP stack.

    f0:    [M, D]        flattened (S*N) initial function values
    w_all: [L, D, 2*D]   stacked fused weights
    b_all: [L, 1, 2*D]   stacked fused biases
    eps:   [L, M, D]     stacked reparameterisation noise
    returns (f_all, mean_all, covar_all), each [L, M_pad, D]
    """
    M, D = f0.shape
    L = w_all.shape[0]

    tile = min(tile_m, _round_up(M, 8))
    tile = _round_up(tile, 8)
    M_pad = _round_up(M, tile)
    if M_pad != M:
        f0 = jnp.pad(f0, ((0, M_pad - M), (0, 0)))
        eps = jnp.pad(eps, ((0, 0), (0, M_pad - M), (0, 0)))

    grid = (M_pad // tile,)
    out_shape = jax.ShapeDtypeStruct((L, M_pad, D), jnp.float32)
    stacked_spec = pl.BlockSpec((L, tile, D), lambda m: (0, m, 0))

    return pl.pallas_call(
        _dgp_stack_kernel,
        out_shape=(out_shape, out_shape, out_shape),
        grid_spec=pltpu.PrefetchScalarGridSpec(
            num_scalar_prefetch=0,
            grid=grid,
            in_specs=[
                pl.BlockSpec((tile, D), lambda m: (m, 0)),          # f0 row tile
                pl.BlockSpec((L, D, 2 * D), lambda m: (0, 0, 0)),   # resident weights
                pl.BlockSpec((L, 1, 2 * D), lambda m: (0, 0, 0)),   # resident biases
                stacked_spec,                                       # eps row tile (all layers)
            ],
            out_specs=[stacked_spec, stacked_spec, stacked_spec],
        ),
        compiler_params=pltpu.CompilerParams(
            dimension_semantics=("parallel",)),
    )(f0, w_all, b_all, eps)


class DGPsPallas:
    """JAX/Pallas equivalent of the PyTorch DGPs forward pass."""

    def __init__(self, layer_dims, num_samples=1, seed=0, tile_m=512):
        assert len(layer_dims) >= 2
        d = layer_dims[0]
        assert all(x == d for x in layer_dims), (
            "fused stack kernel assumes constant layer width")
        self.num_samples = num_samples
        self.layer_dims = layer_dims
        self.tile_m = tile_m

        self.params = []   # per-layer (w_mean, b_mean, w_var, b_var) for reference
        key = jax.random.PRNGKey(seed)
        for d_in, d_out in zip(layer_dims[:-1], layer_dims[1:]):
            key, k1, k2, k3, k4 = jax.random.split(key, 5)
            w_mean = jax.random.normal(k1, (d_in, d_out), jnp.float32) / jnp.sqrt(d_in)
            b_mean = jax.random.normal(k2, (1, d_out), jnp.float32) * 0.1
            w_var = jax.random.normal(k3, (d_in, d_out), jnp.float32) / jnp.sqrt(d_in)
            b_var = jax.random.normal(k4, (1, d_out), jnp.float32) * 0.1
            self.params.append((w_mean, b_mean, w_var, b_var))

        # stacked, matmul-fused parameters for the kernel
        self.w_all = jnp.stack(
            [jnp.concatenate([wm, wv], axis=1) for (wm, _, wv, _) in self.params])
        self.b_all = jnp.stack(
            [jnp.concatenate([bm, bv], axis=1) for (_, bm, _, bv) in self.params])

    # deterministic reparameterisation noise, identical to the reference path
    def _sample_eps(self, S, N):
        eps_key = jax.random.PRNGKey(1234)
        eps_list = []
        for (w_mean, _, _, _) in self.params:
            d_out = w_mean.shape[1]
            eps_key, sub = jax.random.split(eps_key)
            eps_list.append(jax.random.normal(sub, (S, N, d_out), jnp.float32))
        return eps_list

    def forward(self, inputs):
        """inputs: [N, D] -> (fs, means, covars) lists, each element [S, N, D]."""
        N, D = inputs.shape
        S = self.num_samples
        L = len(self.params)
        M = S * N

        # f = inputs.expand([num_samples, -1, -1]); collapse [S, N] -> M rows
        f0 = jnp.broadcast_to(inputs[None, :, :], (S, N, D)).reshape(M, D)
        eps_list = self._sample_eps(S, N)
        eps = jnp.stack([e.reshape(M, D) for e in eps_list])          # (L, M, D)

        f_all, mean_all, covar_all = dgp_stack(
            f0, self.w_all, self.b_all, eps, tile_m=self.tile_m)

        fs = [f_all[l, :M].reshape(S, N, D) for l in range(L)]
        means = [mean_all[l, :M].reshape(S, N, D) for l in range(L)]
        covars = [covar_all[l, :M].reshape(S, N, D) for l in range(L)]
        return fs, means, covars


def _reference_forward(model, inputs):
    """Pure-JAX reference for correctness checking."""
    S = model.num_samples
    N, D = inputs.shape
    f = jnp.broadcast_to(inputs[None, :, :], (S, N, D))
    eps_list = model._sample_eps(S, N)
    fs, means, covars = [], [], []
    for (w_mean, b_mean, w_var, b_var), eps in zip(model.params, eps_list):
        mean = jnp.einsum('snd,de->sne', f, w_mean) + b_mean[None]
        raw = jnp.einsum('snd,de->sne', f, w_var) + b_var[None]
        covar = jax.nn.softplus(raw)
        f = mean + jnp.sqrt(covar) * eps
        fs.append(f)
        means.append(mean)
        covars.append(covar)
    return fs, means, covars


if __name__ == "__main__":
    # Small deterministic example: batch N=8, feature width 32, 3 GP layers,
    # num_samples S=2.
    num_samples = 2
    N, D = 8, 32
    layer_dims = [32, 32, 32, 32]   # 3 layers

    key = jax.random.PRNGKey(0)
    inputs = jax.random.normal(key, (N, D), jnp.float32)

    model = DGPsPallas(layer_dims, num_samples=num_samples, seed=0)

    fs, means, covars = model.forward(inputs)
    jax.block_until_ready(fs[-1])
    jax.block_until_ready(means[-1])
    jax.block_until_ready(covars[-1])

    # correctness check against pure-JAX reference
    ref_fs, ref_means, ref_covars = _reference_forward(model, inputs)
    for a, b in zip(fs + means + covars, ref_fs + ref_means + ref_covars):
        assert a.shape == b.shape
        assert jnp.allclose(a, b, atol=1e-5, rtol=1e-5), "mismatch vs reference"

    print("KERNEL_OK")
</pallas_src>

<mosaic_0001>
module attributes {stable_mosaic.version = 11 : i64} {
  func.func @_dgp_stack_kernel(%arg0: i32, %arg1: memref<16x32xf32, #tpu.memory_space<vmem>>, %arg2: memref<3x32x64xf32, #tpu.memory_space<vmem>>, %arg3: memref<3x1x64xf32, #tpu.memory_space<vmem>>, %arg4: memref<3x16x32xf32, #tpu.memory_space<vmem>>, %arg5: memref<3x16x32xf32, #tpu.memory_space<vmem>>, %arg6: memref<3x16x32xf32, #tpu.memory_space<vmem>>, %arg7: memref<3x16x32xf32, #tpu.memory_space<vmem>>) attributes {dimension_semantics = [#tpu.dimension_semantics<parallel>], iteration_bounds = array<i64: 1>, scalar_prefetch = 0 : i64, scratch_operands = 0 : i64, tpu.core_type = #tpu.core_type<tc>, window_params = [{transform_indices = @transform_0, window_bounds = array<i64: 16, 32>}, {pipeline_mode = #tpu.pipeline_mode<synchronous>, transform_indices = @transform_1, window_bounds = array<i64: 3, 32, 64>}, {pipeline_mode = #tpu.pipeline_mode<synchronous>, transform_indices = @transform_2, window_bounds = array<i64: 3, 1, 64>}, {transform_indices = @transform_3, window_bounds = array<i64: 3, 16, 32>}, {transform_indices = @transform_4, window_bounds = array<i64: 3, 16, 32>}, {transform_indices = @transform_5, window_bounds = array<i64: 3, 16, 32>}, {transform_indices = @transform_6, window_bounds = array<i64: 3, 16, 32>}]} {
    %c0 = arith.constant 0 : index
    %c0_0 = arith.constant 0 : index
    %0 = vector.load %arg1[%c0, %c0_0] : memref<16x32xf32, #tpu.memory_space<vmem>>, vector<16x32xf32>
    %c0_1 = arith.constant 0 : index
    %c0_2 = arith.constant 0 : index
    %c0_3 = arith.constant 0 : index
    %1 = vector.load %arg2[%c0_1, %c0_2, %c0_3] : memref<3x32x64xf32, #tpu.memory_space<vmem>>, vector<1x32x64xf32>
    %2 = vector.shape_cast %1 : vector<1x32x64xf32> to vector<32x64xf32>
    %cst = arith.constant dense<0.000000e+00> : vector<16x64xf32>
    %3 = tpu.matmul %0, %2, %cst {dimension_numbers = #tpu.dot_dimension_numbers<[1], [0], [0], [1], [0, 0, 1, 1], [], []>} : vector<16x32xf32>, vector<32x64xf32>, vector<16x64xf32> -> vector<16x64xf32>
    %c0_4 = arith.constant 0 : index
    %c0_5 = arith.constant 0 : index
    %c0_6 = arith.constant 0 : index
    %4 = vector.load %arg3[%c0_4, %c0_5, %c0_6] : memref<3x1x64xf32, #tpu.memory_space<vmem>>, vector<1x1x64xf32>
    %5 = vector.shape_cast %4 : vector<1x1x64xf32> to vector<1x64xf32>
    %6 = vector.broadcast %5 : vector<1x64xf32> to vector<16x64xf32>
    %7 = arith.addf %3, %6 : vector<16x64xf32>
    %8 = vector.extract_strided_slice %7 {offsets = [0, 0], sizes = [16, 32], strides = [1, 1]} : vector<16x64xf32> to vector<16x32xf32>
    %9 = vector.extract_strided_slice %7 {offsets = [0, 32], sizes = [16, 32], strides = [1, 1]} : vector<16x64xf32> to vector<16x32xf32>
    %cst_7 = arith.constant 0.000000e+00 : f32
    %10 = vector.broadcast %cst_7 : f32 to vector<16x32xf32>
    %11 = arith.maximumf %9, %10 : vector<16x32xf32>
    %12 = math.absf %9 : vector<16x32xf32>
    %cst_8 = arith.constant 0.000000e+00 : f32
    %13 = vector.broadcast %cst_8 : f32 to vector<16x32xf32>
    %14 = arith.subf %13, %12 : vector<16x32xf32>
    %15 = math.exp %14 : vector<16x32xf32>
    %16 = math.log1p %15 : vector<16x32xf32>
    %17 = arith.addf %11, %16 : vector<16x32xf32>
    %18 = math.sqrt %17 : vector<16x32xf32>
    %c0_9 = arith.constant 0 : index
    %c0_10 = arith.constant 0 : index
    %c0_11 = arith.constant 0 : index
    %19 = vector.load %arg4[%c0_9, %c0_10, %c0_11] : memref<3x16x32xf32, #tpu.memory_space<vmem>>, vector<1x16x32xf32>
    %20 = vector.shape_cast %19 : vector<1x16x32xf32> to vector<16x32xf32>
    %21 = arith.mulf %18, %20 : vector<16x32xf32>
    %22 = arith.addf %8, %21 : vector<16x32xf32>
    %c0_12 = arith.constant 0 : index
    %c0_13 = arith.constant 0 : index
    %c0_14 = arith.constant 0 : index
    %23 = vector.load %arg6[%c0_12, %c0_13, %c0_14] : memref<3x16x32xf32, #tpu.memory_space<vmem>>, vector<1x16x32xf32>
    %24 = vector.shape_cast %23 : vector<1x16x32xf32> to vector<16x32xf32>
    %25 = vector.shape_cast %8 : vector<16x32xf32> to vector<1x16x32xf32>
    tpu.vector_store %arg6[%c0_12, %c0_13, %c0_14], %25 {strides = array<i32>} : memref<3x16x32xf32, #tpu.memory_space<vmem>>, vector<1x16x32xf32>,
    %c0_15 = arith.constant 0 : index
    %c0_16 = arith.constant 0 : index
    %c0_17 = arith.constant 0 : index
    %26 = vector.load %arg7[%c0_15, %c0_16, %c0_17] : memref<3x16x32xf32, #tpu.memory_space<vmem>>, vector<1x16x32xf32>
    %27 = vector.shape_cast %26 : vector<1x16x32xf32> to vector<16x32xf32>
    %28 = vector.shape_cast %17 : vector<16x32xf32> to vector<1x16x32xf32>
    tpu.vector_store %arg7[%c0_15, %c0_16, %c0_17], %28 {strides = array<i32>} : memref<3x16x32xf32, #tpu.memory_space<vmem>>, vector<1x16x32xf32>,
    %c0_18 = arith.constant 0 : index
    %c0_19 = arith.constant 0 : index
    %c0_20 = arith.constant 0 : index
    %29 = vector.load %arg5[%c0_18, %c0_19, %c0_20] : memref<3x16x32xf32, #tpu.memory_space<vmem>>, vector<1x16x32xf32>
    %30 = vector.shape_cast %29 : vector<1x16x32xf32> to vector<16x32xf32>
    %31 = vector.shape_cast %22 : vector<16x32xf32> to vector<1x16x32xf32>
    tpu.vector_store %arg5[%c0_18, %c0_19, %c0_20], %31 {strides = array<i32>} : memref<3x16x32xf32, #tpu.memory_space<vmem>>, vector<1x16x32xf32>,
    %c1 = arith.constant 1 : index
    %c0_21 = arith.constant 0 : index
    %c0_22 = arith.constant 0 : index
    %32 = vector.load %arg2[%c1, %c0_21, %c0_22] : memref<3x32x64xf32, #tpu.memory_space<vmem>>, vector<1x32x64xf32>
    %33 = vector.shape_cast %32 : vector<1x32x64xf32> to vector<32x64xf32>
    %cst_23 = arith.constant dense<0.000000e+00> : vector<16x64xf32>
    %34 = tpu.matmul %22, %33, %cst_23 {dimension_numbers = #tpu.dot_dimension_numbers<[1], [0], [0], [1], [0, 0, 1, 1], [], []>} : vector<16x32xf32>, vector<32x64xf32>, vector<16x64xf32> -> vector<16x64xf32>
    %c1_24 = arith.constant 1 : index
    %c0_25 = arith.constant 0 : index
    %c0_26 = arith.constant 0 : index
    %35 = vector.load %arg3[%c1_24, %c0_25, %c0_26] : memref<3x1x64xf32, #tpu.memory_space<vmem>>, vector<1x1x64xf32>
    %36 = vector.shape_cast %35 : vector<1x1x64xf32> to vector<1x64xf32>
    %37 = vector.broadcast %36 : vector<1x64xf32> to vector<16x64xf32>
    %38 = arith.addf %34, %37 : vector<16x64xf32>
    %39 = vector.extract_strided_slice %38 {offsets = [0, 0], sizes = [16, 32], strides = [1, 1]} : vector<16x64xf32> to vector<16x32xf32>
    %40 = vector.extract_strided_slice %38 {offsets = [0, 32], sizes = [16, 32], strides = [1, 1]} : vector<16x64xf32> to vector<16x32xf32>
    %cst_27 = arith.constant 0.000000e+00 : f32
    %41 = vector.broadcast %cst_27 : f32 to vector<16x32xf32>
    %42 = arith.maximumf %40, %41 : vector<16x32xf32>
    %43 = math.absf %40 : vector<16x32xf32>
    %cst_28 = arith.constant 0.000000e+00 : f32
    %44 = vector.broadcast %cst_28 : f32 to vector<16x32xf32>
    %45 = arith.subf %44, %43 : vector<16x32xf32>
    %46 = math.exp %45 : vector<16x32xf32>
    %47 = math.log1p %46 : vector<16x32xf32>
    %48 = arith.addf %42, %47 : vector<16x32xf32>
    %49 = math.sqrt %48 : vector<16x32xf32>
    %c1_29 = arith.constant 1 : index
    %c0_30 = arith.constant 0 : index
    %c0_31 = arith.constant 0 : index
    %50 = vector.load %arg4[%c1_29, %c0_30, %c0_31] : memref<3x16x32xf32, #tpu.memory_space<vmem>>, vector<1x16x32xf32>
    %51 = vector.shape_cast %50 : vector<1x16x32xf32> to vector<16x32xf32>
    %52 = arith.mulf %49, %51 : vector<16x32xf32>
    %53 = arith.addf %39, %52 : vector<16x32xf32>
    %c1_32 = arith.constant 1 : index
    %c0_33 = arith.constant 0 : index
    %c0_34 = arith.constant 0 : index
    %54 = vector.load %arg6[%c1_32, %c0_33, %c0_34] : memref<3x16x32xf32, #tpu.memory_space<vmem>>, vector<1x16x32xf32>
    %55 = vector.shape_cast %54 : vector<1x16x32xf32> to vector<16x32xf32>
    %56 = vector.shape_cast %39 : vector<16x32xf32> to vector<1x16x32xf32>
    tpu.vector_store %arg6[%c1_32, %c0_33, %c0_34], %56 {strides = array<i32>} : memref<3x16x32xf32, #tpu.memory_space<vmem>>, vector<1x16x32xf32>,
    %c1_35 = arith.constant 1 : index
    %c0_36 = arith.constant 0 : index
    %c0_37 = arith.constant 0 : index
    %57 = vector.load %arg7[%c1_35, %c0_36, %c0_37] : memref<3x16x32xf32, #tpu.memory_space<vmem>>, vector<1x16x32xf32>
    %58 = vector.shape_cast %57 : vector<1x16x32xf32> to vector<16x32xf32>
    %59 = vector.shape_cast %48 : vector<16x32xf32> to vector<1x16x32xf32>
    tpu.vector_store %arg7[%c1_35, %c0_36, %c0_37], %59 {strides = array<i32>} : memref<3x16x32xf32, #tpu.memory_space<vmem>>, vector<1x16x32xf32>,
    %c1_38 = arith.constant 1 : index
    %c0_39 = arith.constant 0 : index
    %c0_40 = arith.constant 0 : index
    %60 = vector.load %arg5[%c1_38, %c0_39, %c0_40] : memref<3x16x32xf32, #tpu.memory_space<vmem>>, vector<1x16x32xf32>
    %61 = vector.shape_cast %60 : vector<1x16x32xf32> to vector<16x32xf32>
    %62 = vector.shape_cast %53 : vector<16x32xf32> to vector<1x16x32xf32>
    tpu.vector_store %arg5[%c1_38, %c0_39, %c0_40], %62 {strides = array<i32>} : memref<3x16x32xf32, #tpu.memory_space<vmem>>, vector<1x16x32xf32>,
    %c2 = arith.constant 2 : index
    %c0_41 = arith.constant 0 : index
    %c0_42 = arith.constant 0 : index
    %63 = vector.load %arg2[%c2, %c0_41, %c0_42] : memref<3x32x64xf32, #tpu.memory_space<vmem>>, vector<1x32x64xf32>
    %64 = vector.shape_cast %63 : vector<1x32x64xf32> to vector<32x64xf32>
    %cst_43 = arith.constant dense<0.000000e+00> : vector<16x64xf32>
    %65 = tpu.matmul %53, %64, %cst_43 {dimension_numbers = #tpu.dot_dimension_numbers<[1], [0], [0], [1], [0, 0, 1, 1], [], []>} : vector<16x32xf32>, vector<32x64xf32>, vector<16x64xf32> -> vector<16x64xf32>
    %c2_44 = arith.constant 2 : index
    %c0_45 = arith.constant 0 : index
    %c0_46 = arith.constant 0 : index
    %66 = vector.load %arg3[%c2_44, %c0_45, %c0_46] : memref<3x1x64xf32, #tpu.memory_space<vmem>>, vector<1x1x64xf32>
    %67 = vector.shape_cast %66 : vector<1x1x64xf32> to vector<1x64xf32>
    %68 = vector.broadcast %67 : vector<1x64xf32> to vector<16x64xf32>
    %69 = arith.addf %65, %68 : vector<16x64xf32>
    %70 = vector.extract_strided_slice %69 {offsets = [0, 0], sizes = [16, 32], strides = [1, 1]} : vector<16x64xf32> to vector<16x32xf32>
    %71 = vector.extract_strided_slice %69 {offsets = [0, 32], sizes = [16, 32], strides = [1, 1]} : vector<16x64xf32> to vector<16x32xf32>
    %cst_47 = arith.constant 0.000000e+00 : f32
    %72 = vector.broadcast %cst_47 : f32 to vector<16x32xf32>
    %73 = arith.maximumf %71, %72 : vector<16x32xf32>
    %74 = math.absf %71 : vector<16x32xf32>
    %cst_48 = arith.constant 0.000000e+00 : f32
    %75 = vector.broadcast %cst_48 : f32 to vector<16x32xf32>
    %76 = arith.subf %75, %74 : vector<16x32xf32>
    %77 = math.exp %76 : vector<16x32xf32>
    %78 = math.log1p %77 : vector<16x32xf32>
    %79 = arith.addf %73, %78 : vector<16x32xf32>
    %80 = math.sqrt %79 : vector<16x32xf32>
    %c2_49 = arith.constant 2 : index
    %c0_50 = arith.constant 0 : index
    %c0_51 = arith.constant 0 : index
    %81 = vector.load %arg4[%c2_49, %c0_50, %c0_51] : memref<3x16x32xf32, #tpu.memory_space<vmem>>, vector<1x16x32xf32>
    %82 = vector.shape_cast %81 : vector<1x16x32xf32> to vector<16x32xf32>
    %83 = arith.mulf %80, %82 : vector<16x32xf32>
    %84 = arith.addf %70, %83 : vector<16x32xf32>
    %c2_52 = arith.constant 2 : index
    %c0_53 = arith.constant 0 : index
    %c0_54 = arith.constant 0 : index
    %85 = vector.load %arg6[%c2_52, %c0_53, %c0_54] : memref<3x16x32xf32, #tpu.memory_space<vmem>>, vector<1x16x32xf32>
    %86 = vector.shape_cast %85 : vector<1x16x32xf32> to vector<16x32xf32>
    %87 = vector.shape_cast %70 : vector<16x32xf32> to vector<1x16x32xf32>
    tpu.vector_store %arg6[%c2_52, %c0_53, %c0_54], %87 {strides = array<i32>} : memref<3x16x32xf32, #tpu.memory_space<vmem>>, vector<1x16x32xf32>,
    %c2_55 = arith.constant 2 : index
    %c0_56 = arith.constant 0 : index
    %c0_57 = arith.constant 0 : index
    %88 = vector.load %arg7[%c2_55, %c0_56, %c0_57] : memref<3x16x32xf32, #tpu.memory_space<vmem>>, vector<1x16x32xf32>
    %89 = vector.shape_cast %88 : vector<1x16x32xf32> to vector<16x32xf32>
    %90 = vector.shape_cast %79 : vector<16x32xf32> to vector<1x16x32xf32>
    tpu.vector_store %arg7[%c2_55, %c0_56, %c0_57], %90 {strides = array<i32>} : memref<3x16x32xf32, #tpu.memory_space<vmem>>, vector<1x16x32xf32>,
    %c2_58 = arith.constant 2 : index
    %c0_59 = arith.constant 0 : index
    %c0_60 = arith.constant 0 : index
    %91 = vector.load %arg5[%c2_58, %c0_59, %c0_60] : memref<3x16x32xf32, #tpu.memory_space<vmem>>, vector<1x16x32xf32>
    %92 = vector.shape_cast %91 : vector<1x16x32xf32> to vector<16x32xf32>
    %93 = vector.shape_cast %84 : vector<16x32xf32> to vector<1x16x32xf32>
    tpu.vector_store %arg5[%c2_58, %c0_59, %c0_60], %93 {strides = array<i32>} : memref<3x16x32xf32, #tpu.memory_space<vmem>>, vector<1x16x32xf32>,
    return
  }
  func.func @transform_0(%arg0: i32) -> (i32, i32) {
    %c0_i32 = arith.constant 0 : i32
    %c0_i32_0 = arith.constant 0 : i32
    return %arg0, %c0_i32 : i32, i32
  }
  func.func @transform_1(%arg0: i32) -> (i32, i32, i32) {
    %c0_i32 = arith.constant 0 : i32
    %c0_i32_0 = arith.constant 0 : i32
    %c0_i32_1 = arith.constant 0 : i32
    %c0_i32_2 = arith.constant 0 : i32
    return %c0_i32, %c0_i32_0, %c0_i32_1 : i32, i32, i32
  }
  func.func @transform_2(%arg0: i32) -> (i32, i32, i32) {
    %c0_i32 = arith.constant 0 : i32
    %c0_i32_0 = arith.constant 0 : i32
    %c0_i32_1 = arith.constant 0 : i32
    %c0_i32_2 = arith.constant 0 : i32
    return %c0_i32, %c0_i32_0, %c0_i32_1 : i32, i32, i32
  }
  func.func @transform_3(%arg0: i32) -> (i32, i32, i32) {
    %c0_i32 = arith.constant 0 : i32
    %c0_i32_0 = arith.constant 0 : i32
    %c0_i32_1 = arith.constant 0 : i32
    return %c0_i32, %arg0, %c0_i32_0 : i32, i32, i32
  }
  func.func @transform_4(%arg0: i32) -> (i32, i32, i32) {
    %c0_i32 = arith.constant 0 : i32
    %c0_i32_0 = arith.constant 0 : i32
    %c0_i32_1 = arith.constant 0 : i32
    return %c0_i32, %arg0, %c0_i32_0 : i32, i32, i32
  }
  func.func @transform_5(%arg0: i32) -> (i32, i32, i32) {
    %c0_i32 = arith.constant 0 : i32
    %c0_i32_0 = arith.constant 0 : i32
    %c0_i32_1 = arith.constant 0 : i32
    return %c0_i32, %arg0, %c0_i32_0 : i32, i32, i32
  }
  func.func @transform_6(%arg0: i32) -> (i32, i32, i32) {
    %c0_i32 = arith.constant 0 : i32
    %c0_i32_0 = arith.constant 0 : i32
    %c0_i32_1 = arith.constant 0 : i32
    return %c0_i32, %arg0, %c0_i32_0 : i32, i32, i32
  }
}

</mosaic_0001>

<llo_original>
// kernel: dgp_stack.1
$region0: #{dgp_stack.1}
  #allocation0 [shape = 'u32[]', space=smem, size = 0x4, offset = 0x4, fixed_abs, tag = 'smem constant byte address 0x4 - core index']
  #allocation1 [shape = 'u32[144,128]{1,0:T(1,128)}', space=vmem, size = 0x12000, scoped, tag = 'internal scratch']
  %s0 = inlined_call_operand.hbm [shape: f32[16,32], index: 0, kind: input, shape index: {}]
  %s1 = inlined_call_operand.hbm [shape: f32[3,32,64], index: 1, kind: input, shape index: {}]
  %s2 = inlined_call_operand.vmem [shape: f32[3,1,64], index: 2, kind: input, shape index: {}]
  %s3 = inlined_call_operand.hbm [shape: f32[3,16,32], index: 3, kind: input, shape index: {}]
  %s4 = inlined_call_operand.hbm [shape: f32[3,16,32], index: 4, kind: output, shape index: {0}]
  %s5 = inlined_call_operand.hbm [shape: f32[3,16,32], index: 5, kind: output, shape index: {1}]
  %s6 = inlined_call_operand.hbm [shape: f32[3,16,32], index: 6, kind: output, shape index: {2}]
  %7 = xla_tuple %s4, %s5, %s6
  %s8 = sld [smem:[#allocation0]]
  $region54: #{dgp_stack.1} parent=0
    _
  %s10 = ssub.s32 1, %s8
  %s11 = scalar_select 0, %s10, %s8
  $region1: #{dgp_stack.1} parent=0
    #allocation2 [shape = 'u8[8192]{0}', space=vmem, size = 0x2000, scoped, tag = 'input window, operand 0, single buffered']
    #allocation3 [shape = 's32[1]{0}', space=sflag, size = 0x4, scoped, tag = 'scoped memory for dgp_stack.1']
    #allocation4 [shape = 's32[1]{0}', space=sflag, size = 0x4, scoped, tag = 'scoped memory for dgp_stack.1']
    #allocation5 [shape = 'u8[49152]{0}', space=vmem, size = 0xc000, scoped, tag = 'input window, operand 1, single buffered']
    #allocation6 [shape = 's32[1]{0}', space=sflag, size = 0x4, scoped, tag = 'scoped memory for dgp_stack.1']
    #allocation7 [shape = 'u8[24576]{0}', space=vmem, size = 0x6000, scoped, tag = 'input window, operand 3, single buffered']
    #allocation8 [shape = 'u8[24576]{0}', space=vmem, size = 0x6000, scoped, tag = 'output window, operand 0, single buffered']
    #allocation9 [shape = 'u8[24576]{0}', space=vmem, size = 0x6000, scoped, tag = 'output window, operand 1, single buffered']
    #allocation10 [shape = 's32[1]{0}', space=sflag, size = 0x4, scoped, tag = 'scoped memory for dgp_stack.1']
    #allocation11 [shape = 'u8[24576]{0}', space=vmem, size = 0x6000, scoped, tag = 'output window, operand 2, single buffered']
    %12 = vsyncpa [#allocation3], 0
    %13 = vsyncpa [#allocation6], 0
    %14 = vsyncpa [#allocation4], 0
    %15 = vsyncpa [#allocation10], 0
    // Predicated region
    $region2: #{dgp_stack.1} parent=1 // pred_check
      _
    $region3: #{dgp_stack.1} parent=1 // pred_check_branch
      %17 = sbr.rel (0) target = $region5
    $region4: #{dgp_stack.1} parent=1 // pred_region
      %s19 = ssub.s32 256, 256
      %20 = vsyncadd [#allocation3], %s19
      %s21 = sshll.u32 [#allocation2], 4
      %s22 = int_to_ptr.vmem [resolvable:$true] %s21
      %27 = dma.hbm_to_vmem [thread:$0]  %s0, 256, %s22, [#allocation3], 128, 128, 8
    $region5: #{dgp_stack.1} parent=1 // pred_fallthru
      _
    // Predicated region
    $region6: #{dgp_stack.1} parent=1 // pred_check
      _
    $region7: #{dgp_stack.1} parent=1 // pred_check_branch
      %29 = sbr.rel (0) target = $region9
    $region8: #{dgp_stack.1} parent=1 // pred_region
      %s31 = ssub.s32 1536, 1536
      %32 = vsyncadd [#allocation6], %s31
      %s33 = sshll.u32 [#allocation5], 4
      %s34 = int_to_ptr.vmem [resolvable:$true] %s33
      %39 = dma.hbm_to_vmem [thread:$0]  %s1, 1536, %s34, [#allocation6], 128, 128, 8
    $region9: #{dgp_stack.1} parent=1 // pred_fallthru
      _
    // Predicated region
    $region10: #{dgp_stack.1} parent=1 // pred_check
      _
    $region11: #{dgp_stack.1} parent=1 // pred_check_branch
      %41 = sbr.rel (0) target = $region13
    $region12: #{dgp_stack.1} parent=1 // pred_region
      _
    $region13: #{dgp_stack.1} parent=1 // pred_fallthru
      _
    // Predicated region
    $region14: #{dgp_stack.1} parent=1 // pred_check
      _
    $region15: #{dgp_stack.1} parent=1 // pred_check_branch
      %43 = sbr.rel (0) target = $region17
    $region16: #{dgp_stack.1} parent=1 // pred_region
      %s45 = ssub.s32 768, 768
      %46 = vsyncadd [#allocation6], %s45
      %s47 = sshll.u32 [#allocation7], 4
      %s48 = int_to_ptr.vmem [resolvable:$true] %s47
      %53 = dma.hbm_to_vmem [thread:$0]  %s3, 768, %s48, [#allocation6], 128, 128, 8
    $region17: #{dgp_stack.1} parent=1 // pred_fallthru
      _
    // Predicated region
    $region18: #{dgp_stack.1} parent=1 // pred_check
      _
    $region19: #{dgp_stack.1} parent=1 // pred_check_branch
      %55 = sbr.rel (0) target = $region21
    $region20: #{dgp_stack.1} parent=1 // pred_region
      %56 = dma.done [#allocation3], 256
    $region21: #{dgp_stack.1} parent=1 // pred_fallthru
      _
    // Predicated region
    $region22: #{dgp_stack.1} parent=1 // pred_check
      _
    $region23: #{dgp_stack.1} parent=1 // pred_check_branch
      %58 = sbr.rel (0) target = $region25
    $region24: #{dgp_stack.1} parent=1 // pred_region
      %59 = dma.done [#allocation6], 1536
    $region25: #{dgp_stack.1} parent=1 // pred_fallthru
      _
    // Predicated region
    $region26: #{dgp_stack.1} parent=1 // pred_check
      _
    $region27: #{dgp_stack.1} parent=1 // pred_check_branch
      %61 = sbr.rel (0) target = $region29
    $region28: #{dgp_stack.1} parent=1 // pred_region
      %62 = dma.done [#allocation6], 768
    $region29: #{dgp_stack.1} parent=1 // pred_fallthru
      _
    %v63 = vld [vmem:[#allocation2] sm:$0xff]
    %v64 = vld [vmem:[#allocation2 + $0x8] sm:$0xff]
    %v65 = vld [vmem:[#allocation5] sm:$0xff]
    %v66 = vld [vmem:[#allocation5 + $0x8] sm:$0xff]
    %v67 = vld [vmem:[#allocation5 + $0x10] sm:$0xff]
    %v68 = vld [vmem:[#allocation5 + $0x18] sm:$0xff]
    %v69 = vld [vmem:[%s2] sm:$0x1]
    %v71 = vlaneseq
    %v72 = vshrl.u32 %v71, 7
    %v73 = vsub.s32 0, %v72
    %v74 = vrot.slane %v69, %v73
    %vm76 = vcmask 261120
    %v78 = vsel %vm76, %v63, 0
    %v81 = vsel %vm76, %v64, 0
    %83 = vmatprep.subr.mxu0 0.0
    %84 = vmatpush1.msra.mxu0 %v65
    %85 = vmatprep.subr.mxu0 0.0
    %86 = vmatpush1.msra.mxu0 %v66
    %87 = vmatprep.subr.mxu0 0.0
    %88 = vmatpush1.msra.mxu0 %v67
    %89 = vmatprep.subr.mxu0 0.0
    %90 = vmatpush1.msra.mxu0 %v68
    %91 = vmatprep.subr.mxu0 0.0
    %92 = vmatpush1.msra.mxu0 0.0
    %93 = vmatprep.subr.mxu0 0.0
    %94 = vmatpush1.msra.mxu0 0.0
    %95 = vmatprep.subr.mxu0 0.0
    %96 = vmatpush1.msra.mxu0 0.0
    %97 = vmatprep.subr.mxu0 0.0
    %98 = vmatpush1.msra.mxu0 0.0
    %99 = vmatprep.subr.mxu0 0.0
    %100 = vmatpush1.msra.mxu0 0.0
    %101 = vmatprep.subr.mxu0 0.0
    %102 = vmatpush1.msra.mxu0 0.0
    %103 = vmatprep.subr.mxu0 0.0
    %104 = vmatpush1.msra.mxu0 0.0
    %105 = vmatprep.subr.mxu0 0.0
    %106 = vmatpush1.msra.mxu0 0.0
    %107 = vmatprep.subr.mxu0 0.0
    %108 = vmatpush1.msra.mxu0 0.0
    %109 = vmatprep.subr.mxu0 0.0
    %110 = vmatpush1.msra.mxu0 0.0
    %111 = vmatprep.subr.mxu0 0.0
    %112 = vmatpush1.msra.mxu0 0.0
    %113 = vmatprep.subr.mxu0 0.0
    %114 = vmatpush1.msra.mxu0 0.0
    %115 = vmatprep.subr.mxu0 0.0
    %116 = vmatpush1.msra.mxu0 0.0
    %117 = vmatprep.subr.mxu0 0.0
    %118 = vmatpush1.msra.mxu0 0.0
    %119 = vmatprep.subr.mxu0 0.0
    %120 = vmatpush1.msra.mxu0 0.0
    %121 = vmatprep.subr.mxu0 0.0
    %122 = vmatpush1.msra.mxu0 0.0
    %123 = vmatprep.subr.mxu0 0.0
    %124 = vmatpush1.msra.mxu0 0.0
    %125 = vmatprep.subr.mxu0 0.0
    %126 = vmatpush1.msra.mxu0 0.0
    %127 = vmatprep.subr.mxu0 0.0
    %128 = vmatpush1.msra.mxu0 0.0
    %129 = vmatprep.subr.mxu0 0.0
    %130 = vmatpush1.msra.mxu0 0.0
    %131 = vmatprep.subr.mxu0 0.0
    %132 = vmatpush1.msra.mxu0 0.0
    %133 = vmatprep.subr.mxu0 0.0
    %134 = vmatpush1.msra.mxu0 0.0
    %135 = vmatprep.subr.mxu0 0.0
    %136 = vmatpush1.msra.mxu0 0.0
    %137 = vmatprep.subr.mxu0 0.0
    %138 = vmatpush1.msra.mxu0 0.0
    %139 = vmatprep.subr.mxu0 0.0
    %140 = vmatpush1.msra.mxu0 0.0
    %141 = vmatprep.subr.mxu0 0.0
    %142 = vmatpush1.msra.mxu0 0.0
    %143 = vmatprep.subr.mxu0 0.0
    %144 = vmatpush1.msra.mxu0 0.0
    %145 = vmatprep.subr.mxu0 0.0
    %146 = vmatpush1.msra.mxu0 0.0
    %147 = vmatprep.mubr.f32.mxu0 0.0
    %148 = vmatmul.mubr.f32.gmra.mrb[0].mxu0 %v78
    %v149 = vpop.f32.mrb[0].mxu0
    %v150 = vadd.f32 %v74, %v149
    %v151 = vpop.f32.mrb[0].mxu0
    %152 = vmatprep.mubr.f32.mxu0 0.0
    %153 = vmatmul.mubr.f32.gmra.mrb[0].mxu0 %v81
    %v154 = vpop.f32.mrb[0].mxu0
    %v155 = vadd.f32 %v74, %v154
    %v156 = vpop.f32.mrb[0].mxu0
    %157 = vdwg.mxu0
    %v158 = vmax.f32 %v150, 0.0
    %v159 = vmax.f32 %v155, 0.0
    %v160 = vand.u32 2147483647, %v150
    %v161 = vand.u32 2147483647, %v155
    %v162 = vsub.f32 0.0, %v160
    %v163 = vsub.f32 0.0, %v161
    %v164 = vmul.f32 %v162, 1.442695
    %v165 = vpow.pop %v164
    %v166 = vmul.f32 %v163, 1.442695
    %v167 = vpow.pop %v166
    %v168 = vadd.f32 %v165, 1.0
    %v169 = vlog2.pop %v168
    %v170 = vmul.f32 %v169, 0.6931472
    %v171 = vmul.f32 -0.5, %v165
    %v172 = vadd.f32 %v171, 1.0
    %v173 = vmul.f32 %v172, %v165
    %v174 = vand.u32 2147483647, %v165
    %vm175 = vcmp.lt.f32.partialorder %v174, 0.0004427343
    %v176 = vsel %vm175, %v173, %v170
    %v177 = vadd.f32 %v167, 1.0
    %v178 = vlog2.pop %v177
    %v179 = vmul.f32 %v178, 0.6931472
    %v180 = vmul.f32 -0.5, %v167
    %v181 = vadd.f32 %v180, 1.0
    %v182 = vmul.f32 %v181, %v167
    %v183 = vand.u32 2147483647, %v167
    %vm184 = vcmp.lt.f32.partialorder %v183, 0.0004427343
    %v185 = vsel %vm184, %v182, %v179
    %v186 = vadd.f32 %v158, %v176
    %v187 = vadd.f32 %v159, %v185
    %v188 = vrsqrt.pop %v186
    %v189 = vmul.f32 %v186, %v188
    %vm190 = vcmp.eq.f32.partialorder %v186, inf
    %v191 = vsel %vm190, %v186, %v189
    %vm192 = vcmp.eq.f32.partialorder %v186, 0.0
    %v193 = vand.u32 %v186, 2147483648
    %v194 = vsel %vm192, %v193, %v191
    %v195 = vrsqrt.pop %v187
    %v196 = vmul.f32 %v187, %v195
    %vm197 = vcmp.eq.f32.partialorder %v187, inf
    %v198 = vsel %vm197, %v187, %v196
    %vm199 = vcmp.eq.f32.partialorder %v187, 0.0
    %v200 = vand.u32 %v187, 2147483648
    %v201 = vsel %vm199, %v200, %v198
    %v202 = vld [vmem:[#allocation7] sm:$0xff]
    %v203 = vld [vmem:[#allocation7 + $0x8] sm:$0xff]
    %206 = vrot.lane.b32.xlu0 %v202, 32
    %v207 = vpop.permute.xlu0 %206
    %208 = vrot.lane.b32.xlu0 %v203, 32
    %v209 = vpop.permute.xlu0 %208
    %v212 = vmul.f32 %v194, %v207
    %v213 = vmul.f32 %v201, %v209
    %216 = vrot.lane.b32.xlu0 %v212, 96
    %v217 = vpop.permute.xlu0 %216
    %218 = vrot.lane.b32.xlu0 %v213, 96
    %v219 = vpop.permute.xlu0 %218
    %v222 = vadd.f32 %v150, %v217
    %v223 = vadd.f32 %v155, %v219
    %224 = vst.msk [vmem:[#allocation9] sm:$0xff] %vm76, %v150
    %225 = vst.msk [vmem:[#allocation9 + $0x8] sm:$0xff] %vm76, %v155
    %228 = vrot.lane.b32.xlu0 %v186, 96
    %v229 = vpop.permute.xlu0 %228
    %230 = vrot.lane.b32.xlu0 %v187, 96
    %v231 = vpop.permute.xlu0 %230
    %234 = vst.msk [vmem:[#allocation11] sm:$0xff] %vm76, %v229
    %235 = vst.msk [vmem:[#allocation11 + $0x8] sm:$0xff] %vm76, %v231
    %236 = vst.msk [vmem:[#allocation8] sm:$0xff] %vm76, %v222
    %237 = vst.msk [vmem:[#allocation8 + $0x8] sm:$0xff] %vm76, %v223
    %s238 = scalar_lea.vmem [#allocation5], 32
    %v239 = vld [vmem:[%s238] sm:$0xff]
    %v240 = vld [vmem:[%s238 + $0x8] sm:$0xff]
    %v241 = vld [vmem:[%s238 + $0x10] sm:$0xff]
    %v242 = vld [vmem:[%s238 + $0x18] sm:$0xff]
    %s243 = scalar_lea.vmem %s2, 1
    %v244 = vld [vmem:[%s243] sm:$0x1]
    %v246 = vlaneseq
    %v247 = vshrl.u32 %v246, 7
    %v248 = vsub.s32 0, %v247
    %v249 = vrot.slane %v244, %v248
    %v252 = vsel %vm76, %v222, 0
    %v255 = vsel %vm76, %v223, 0
    %257 = vmatprep.subr.mxu0 0.0
    %258 = vmatpush1.msra.mxu0 %v239
    %259 = vmatprep.subr.mxu0 0.0
    %260 = vmatpush1.msra.mxu0 %v240
    %261 = vmatprep.subr.mxu0 0.0
    %262 = vmatpush1.msra.mxu0 %v241
    %263 = vmatprep.subr.mxu0 0.0
    %264 = vmatpush1.msra.mxu0 %v242
    %265 = vmatprep.subr.mxu0 0.0
    %266 = vmatpush1.msra.mxu0 0.0
    %267 = vmatprep.subr.mxu0 0.0
    %268 = vmatpush1.msra.mxu0 0.0
    %269 = vmatprep.subr.mxu0 0.0
    %270 = vmatpush1.msra.mxu0 0.0
    %271 = vmatprep.subr.mxu0 0.0
    %272 = vmatpush1.msra.mxu0 0.0
    %273 = vmatprep.subr.mxu0 0.0
    %274 = vmatpush1.msra.mxu0 0.0
    %275 = vmatprep.subr.mxu0 0.0
    %276 = vmatpush1.msra.mxu0 0.0
    %277 = vmatprep.subr.mxu0 0.0
    %278 = vmatpush1.msra.mxu0 0.0
    %279 = vmatprep.subr.mxu0 0.0
    %280 = vmatpush1.msra.mxu0 0.0
    %281 = vmatprep.subr.mxu0 0.0
    %282 = vmatpush1.msra.mxu0 0.0
    %283 = vmatprep.subr.mxu0 0.0
    %284 = vmatpush1.msra.mxu0 0.0
    %285 = vmatprep.subr.mxu0 0.0
    %286 = vmatpush1.msra.mxu0 0.0
    %287 = vmatprep.subr.mxu0 0.0
    %288 = vmatpush1.msra.mxu0 0.0
    %289 = vmatprep.subr.mxu0 0.0
    %290 = vmatpush1.msra.mxu0 0.0
    %291 = vmatprep.subr.mxu0 0.0
    %292 = vmatpush1.msra.mxu0 0.0
    %293 = vmatprep.subr.mxu0 0.0
    %294 = vmatpush1.msra.mxu0 0.0
    %295 = vmatprep.subr.mxu0 0.0
    %296 = vmatpush1.msra.mxu0 0.0
    %297 = vmatprep.subr.mxu0 0.0
    %298 = vmatpush1.msra.mxu0 0.0
    %299 = vmatprep.subr.mxu0 0.0
    %300 = vmatpush1.msra.mxu0 0.0
    %301 = vmatprep.subr.mxu0 0.0
    %302 = vmatpush1.msra.mxu0 0.0
    %303 = vmatprep.subr.mxu0 0.0
    %304 = vmatpush1.msra.mxu0 0.0
    %305 = vmatprep.subr.mxu0 0.0
    %306 = vmatpush1.msra.mxu0 0.0
    %307 = vmatprep.subr.mxu0 0.0
    %308 = vmatpush1.msra.mxu0 0.0
    %309 = vmatprep.subr.mxu0 0.0
    %310 = vmatpush1.msra.mxu0 0.0
    %311 = vmatprep.subr.mxu0 0.0
    %312 = vmatpush1.msra.mxu0 0.0
    %313 = vmatprep.subr.mxu0 0.0
    %314 = vmatpush1.msra.mxu0 0.0
    %315 = vmatprep.subr.mxu0 0.0
    %316 = vmatpush1.msra.mxu0 0.0
    %317 = vmatprep.subr.mxu0 0.0
    %318 = vmatpush1.msra.mxu0 0.0
    %319 = vmatprep.subr.mxu0 0.0
    %320 = vmatpush1.msra.mxu0 0.0
    %321 = vmatprep.mubr.f32.mxu0 0.0
    %322 = vmatmul.mubr.f32.gmra.mrb[0].mxu0 %v252
    %v323 = vpop.f32.mrb[0].mxu0
    %v324 = vadd.f32 %v249, %v323
    %v325 = vpop.f32.mrb[0].mxu0
    %326 = vmatprep.mubr.f32.mxu0 0.0
    %327 = vmatmul.mubr.f32.gmra.mrb[0].mxu0 %v255
    %v328 = vpop.f32.mrb[0].mxu0
    %v329 = vadd.f32 %v249, %v328
    %v330 = vpop.f32.mrb[0].mxu0
    %331 = vdwg.mxu0
    %v332 = vmax.f32 %v324, 0.0
    %v333 = vmax.f32 %v329, 0.0
    %v334 = vand.u32 2147483647, %v324
    %v335 = vand.u32 2147483647, %v329
    %v336 = vsub.f32 0.0, %v334
    %v337 = vsub.f32 0.0, %v335
    %v338 = vmul.f32 %v336, 1.442695
    %v339 = vpow.pop %v338
    %v340 = vmul.f32 %v337, 1.442695
    %v341 = vpow.pop %v340
    %v342 = vadd.f32 %v339, 1.0
    %v343 = vlog2.pop %v342
    %v344 = vmul.f32 %v343, 0.6931472
    %v345 = vmul.f32 -0.5, %v339
    %v346 = vadd.f32 %v345, 1.0
    %v347 = vmul.f32 %v346, %v339
    %v348 = vand.u32 2147483647, %v339
    %vm349 = vcmp.lt.f32.partialorder %v348, 0.0004427343
    %v350 = vsel %vm349, %v347, %v344
    %v351 = vadd.f32 %v341, 1.0
    %v352 = vlog2.pop %v351
    %v353 = vmul.f32 %v352, 0.6931472
    %v354 = vmul.f32 -0.5, %v341
    %v355 = vadd.f32 %v354, 1.0
    %v356 = vmul.f32 %v355, %v341
    %v357 = vand.u32 2147483647, %v341
    %vm358 = vcmp.lt.f32.partialorder %v357, 0.0004427343
    %v359 = vsel %vm358, %v356, %v353
    %v360 = vadd.f32 %v332, %v350
    %v361 = vadd.f32 %v333, %v359
    %v362 = vrsqrt.pop %v360
    %v363 = vmul.f32 %v360, %v362
    %vm364 = vcmp.eq.f32.partialorder %v360, inf
    %v365 = vsel %vm364, %v360, %v363
    %vm366 = vcmp.eq.f32.partialorder %v360, 0.0
    %v367 = vand.u32 %v360, 2147483648
    %v368 = vsel %vm366, %v367, %v365
    %v369 = vrsqrt.pop %v361
    %v370 = vmul.f32 %v361, %v369
    %vm371 = vcmp.eq.f32.partialorder %v361, inf
    %v372 = vsel %vm371, %v361, %v370
    %vm373 = vcmp.eq.f32.partialorder %v361, 0.0
    %v374 = vand.u32 %v361, 2147483648
    %v375 = vsel %vm373, %v374, %v372
    %s376 = scalar_lea.vmem [#allocation7], 16
    %v377 = vld [vmem:[%s376] sm:$0xff]
    %v378 = vld [vmem:[%s376 + $0x8] sm:$0xff]
    %381 = vrot.lane.b32.xlu0 %v377, 32
    %v382 = vpop.permute.xlu0 %381
    %383 = vrot.lane.b32.xlu0 %v378, 32
    %v384 = vpop.permute.xlu0 %383
    %v387 = vmul.f32 %v368, %v382
    %v388 = vmul.f32 %v375, %v384
    %391 = vrot.lane.b32.xlu0 %v387, 96
    %v392 = vpop.permute.xlu0 %391
    %393 = vrot.lane.b32.xlu0 %v388, 96
    %v394 = vpop.permute.xlu0 %393
    %v397 = vadd.f32 %v324, %v392
    %v398 = vadd.f32 %v329, %v394
    %s399 = scalar_lea.vmem [#allocation9], 16
    %400 = vst.msk [vmem:[%s399] sm:$0xff] %vm76, %v324
    %401 = vst.msk [vmem:[%s399 + $0x8] sm:$0xff] %vm76, %v329
    %404 = vrot.lane.b32.xlu0 %v360, 96
    %v405 = vpop.permute.xlu0 %404
    %406 = vrot.lane.b32.xlu0 %v361, 96
    %v407 = vpop.permute.xlu0 %406
    %s410 = scalar_lea.vmem [#allocation11], 16
    %411 = vst.msk [vmem:[%s410] sm:$0xff] %vm76, %v405
    %412 = vst.msk [vmem:[%s410 + $0x8] sm:$0xff] %vm76, %v407
    %s413 = scalar_lea.vmem [#allocation8], 16
    %414 = vst.msk [vmem:[%s413] sm:$0xff] %vm76, %v397
    %415 = vst.msk [vmem:[%s413 + $0x8] sm:$0xff] %vm76, %v398
    %s416 = scalar_lea.vmem [#allocation5], 64
    %v417 = vld [vmem:[%s416] sm:$0xff]
    %v418 = vld [vmem:[%s416 + $0x8] sm:$0xff]
    %v419 = vld [vmem:[%s416 + $0x10] sm:$0xff]
    %v420 = vld [vmem:[%s416 + $0x18] sm:$0xff]
    %s421 = scalar_lea.vmem %s2, 2
    %v422 = vld [vmem:[%s421] sm:$0x1]
    %v424 = vlaneseq
    %v425 = vshrl.u32 %v424, 7
    %v426 = vsub.s32 0, %v425
    %v427 = vrot.slane %v422, %v426
    %v430 = vsel %vm76, %v397, 0
    %v433 = vsel %vm76, %v398, 0
    %435 = vmatprep.subr.mxu0 0.0
    %436 = vmatpush1.msra.mxu0 %v417
    %437 = vmatprep.subr.mxu0 0.0
    %438 = vmatpush1.msra.mxu0 %v418
    %439 = vmatprep.subr.mxu0 0.0
    %440 = vmatpush1.msra.mxu0 %v419
    %441 = vmatprep.subr.mxu0 0.0
    %442 = vmatpush1.msra.mxu0 %v420
    %443 = vmatprep.subr.mxu0 0.0
    %444 = vmatpush1.msra.mxu0 0.0
    %445 = vmatprep.subr.mxu0 0.0
    %446 = vmatpush1.msra.mxu0 0.0
    %447 = vmatprep.subr.mxu0 0.0
    %448 = vmatpush1.msra.mxu0 0.0
    %449 = vmatprep.subr.mxu0 0.0
    %450 = vmatpush1.msra.mxu0 0.0
    %451 = vmatprep.subr.mxu0 0.0
    %452 = vmatpush1.msra.mxu0 0.0
    %453 = vmatprep.subr.mxu0 0.0
    %454 = vmatpush1.msra.mxu0 0.0
    %455 = vmatprep.subr.mxu0 0.0
    %456 = vmatpush1.msra.mxu0 0.0
    %457 = vmatprep.subr.mxu0 0.0
    %458 = vmatpush1.msra.mxu0 0.0
    %459 = vmatprep.subr.mxu0 0.0
    %460 = vmatpush1.msra.mxu0 0.0
    %461 = vmatprep.subr.mxu0 0.0
    %462 = vmatpush1.msra.mxu0 0.0
    %463 = vmatprep.subr.mxu0 0.0
    %464 = vmatpush1.msra.mxu0 0.0
    %465 = vmatprep.subr.mxu0 0.0
    %466 = vmatpush1.msra.mxu0 0.0
    %467 = vmatprep.subr.mxu0 0.0
    %468 = vmatpush1.msra.mxu0 0.0
    %469 = vmatprep.subr.mxu0 0.0
    %470 = vmatpush1.msra.mxu0 0.0
    %471 = vmatprep.subr.mxu0 0.0
    %472 = vmatpush1.msra.mxu0 0.0
    %473 = vmatprep.subr.mxu0 0.0
    %474 = vmatpush1.msra.mxu0 0.0
    %475 = vmatprep.subr.mxu0 0.0
    %476 = vmatpush1.msra.mxu0 0.0
    %477 = vmatprep.subr.mxu0 0.0
    %478 = vmatpush1.msra.mxu0 0.0
    %479 = vmatprep.subr.mxu0 0.0
    %480 = vmatpush1.msra.mxu0 0.0
    %481 = vmatprep.subr.mxu0 0.0
    %482 = vmatpush1.msra.mxu0 0.0
    %483 = vmatprep.subr.mxu0 0.0
    %484 = vmatpush1.msra.mxu0 0.0
    %485 = vmatprep.subr.mxu0 0.0
    %486 = vmatpush1.msra.mxu0 0.0
    %487 = vmatprep.subr.mxu0 0.0
    %488 = vmatpush1.msra.mxu0 0.0
    %489 = vmatprep.subr.mxu0 0.0
    %490 = vmatpush1.msra.mxu0 0.0
    %491 = vmatprep.subr.mxu0 0.0
    %492 = vmatpush1.msra.mxu0 0.0
    %493 = vmatprep.subr.mxu0 0.0
    %494 = vmatpush1.msra.mxu0 0.0
    %495 = vmatprep.subr.mxu0 0.0
    %496 = vmatpush1.msra.mxu0 0.0
    %497 = vmatprep.subr.mxu0 0.0
    %498 = vmatpush1.msra.mxu0 0.0
    %499 = vmatprep.mubr.f32.mxu0 0.0
    %500 = vmatmul.mubr.f32.gmra.mrb[0].mxu0 %v430
    %v501 = vpop.f32.mrb[0].mxu0
    %v502 = vadd.f32 %v427, %v501
    %v503 = vpop.f32.mrb[0].mxu0
    %504 = vmatprep.mubr.f32.mxu0 0.0
    %505 = vmatmul.mubr.f32.gmra.mrb[0].mxu0 %v433
    %v506 = vpop.f32.mrb[0].mxu0
    %v507 = vadd.f32 %v427, %v506
    %v508 = vpop.f32.mrb[0].mxu0
    %509 = vdwg.mxu0
    %v510 = vmax.f32 %v502, 0.0
    %v511 = vmax.f32 %v507, 0.0
    %v512 = vand.u32 2147483647, %v502
    %v513 = vand.u32 2147483647, %v507
    %v514 = vsub.f32 0.0, %v512
    %v515 = vsub.f32 0.0, %v513
    %v516 = vmul.f32 %v514, 1.442695
    %v517 = vpow.pop %v516
    %v518 = vmul.f32 %v515, 1.442695
    %v519 = vpow.pop %v518
    %v520 = vadd.f32 %v517, 1.0
    %v521 = vlog2.pop %v520
    %v522 = vmul.f32 %v521, 0.6931472
    %v523 = vmul.f32 -0.5, %v517
    %v524 = vadd.f32 %v523, 1.0
    %v525 = vmul.f32 %v524, %v517
    %v526 = vand.u32 2147483647, %v517
    %vm527 = vcmp.lt.f32.partialorder %v526, 0.0004427343
    %v528 = vsel %vm527, %v525, %v522
    %v529 = vadd.f32 %v519, 1.0
    %v530 = vlog2.pop %v529
    %v531 = vmul.f32 %v530, 0.6931472
    %v532 = vmul.f32 -0.5, %v519
    %v533 = vadd.f32 %v532, 1.0
    %v534 = vmul.f32 %v533, %v519
    %v535 = vand.u32 2147483647, %v519
    %vm536 = vcmp.lt.f32.partialorder %v535, 0.0004427343
    %v537 = vsel %vm536, %v534, %v531
    %v538 = vadd.f32 %v510, %v528
    %v539 = vadd.f32 %v511, %v537
    %v540 = vrsqrt.pop %v538
    %v541 = vmul.f32 %v538, %v540
    %vm542 = vcmp.eq.f32.partialorder %v538, inf
    %v543 = vsel %vm542, %v538, %v541
    %vm544 = vcmp.eq.f32.partialorder %v538, 0.0
    %v545 = vand.u32 %v538, 2147483648
    %v546 = vsel %vm544, %v545, %v543
    %v547 = vrsqrt.pop %v539
    %v548 = vmul.f32 %v539, %v547
    %vm549 = vcmp.eq.f32.partialorder %v539, inf
    %v550 = vsel %vm549, %v539, %v548
    %vm551 = vcmp.eq.f32.partialorder %v539, 0.0
    %v552 = vand.u32 %v539, 2147483648
    %v553 = vsel %vm551, %v552, %v550
    %s554 = scalar_lea.vmem [#allocation7], 32
    %v555 = vld [vmem:[%s554] sm:$0xff]
    %v556 = vld [vmem:[%s554 + $0x8] sm:$0xff]
    %559 = vrot.lane.b32.xlu0 %v555, 32
    %v560 = vpop.permute.xlu0 %559
    %561 = vrot.lane.b32.xlu0 %v556, 32
    %v562 = vpop.permute.xlu0 %561
    %v565 = vmul.f32 %v546, %v560
    %v566 = vmul.f32 %v553, %v562
    %569 = vrot.lane.b32.xlu0 %v565, 96
    %v570 = vpop.permute.xlu0 %569
    %571 = vrot.lane.b32.xlu0 %v566, 96
    %v572 = vpop.permute.xlu0 %571
    %v575 = vadd.f32 %v502, %v570
    %v576 = vadd.f32 %v507, %v572
    %s577 = scalar_lea.vmem [#allocation9], 32
    %578 = vst.msk [vmem:[%s577] sm:$0xff] %vm76, %v502
    %579 = vst.msk [vmem:[%s577 + $0x8] sm:$0xff] %vm76, %v507
    %582 = vrot.lane.b32.xlu0 %v538, 96
    %v583 = vpop.permute.xlu0 %582
    %584 = vrot.lane.b32.xlu0 %v539, 96
    %v585 = vpop.permute.xlu0 %584
    %s588 = scalar_lea.vmem [#allocation11], 32
    %589 = vst.msk [vmem:[%s588] sm:$0xff] %vm76, %v583
    %590 = vst.msk [vmem:[%s588 + $0x8] sm:$0xff] %vm76, %v585
    %s591 = scalar_lea.vmem [#allocation8], 32
    %592 = vst.msk [vmem:[%s591] sm:$0xff] %vm76, %v575
    %593 = vst.msk [vmem:[%s591 + $0x8] sm:$0xff] %vm76, %v576
    // Predicated region
    $region30: #{dgp_stack.1} parent=1 // pred_check
      _
    $region31: #{dgp_stack.1} parent=1 // pred_check_branch
      %595 = sbr.rel (0) target = $region33
    $region32: #{dgp_stack.1} parent=1 // pred_region
      %s597 = ssub.s32 768, 768
      %598 = vsyncadd [#allocation4], %s597
      %s599 = sshll.u32 [#allocation8], 4
      %s600 = int_to_ptr.vmem [resolvable:$true] %s599
      %605 = dma.vmem_to_hbm [thread:$0]  %s600, 768, %s4, [#allocation4], 128, 128, 8
    $region33: #{dgp_stack.1} parent=1 // pred_fallthru
      _
    // Predicated region
    $region34: #{dgp_stack.1} parent=1 // pred_check
      _
    $region35: #{dgp_stack.1} parent=1 // pred_check_branch
      %607 = sbr.rel (0) target = $region37
    $region36: #{dgp_stack.1} parent=1 // pred_region
      %s609 = ssub.s32 768, 768
      %610 = vsyncadd [#allocation10], %s609
      %s611 = sshll.u32 [#allocation9], 4
      %s612 = int_to_ptr.vmem [resolvable:$true] %s611
      %617 = dma.vmem_to_hbm [thread:$0]  %s612, 768, %s5, [#allocation10], 128, 128, 8
    $region37: #{dgp_stack.1} parent=1 // pred_fallthru
      _
    // Predicated region
    $region38: #{dgp_stack.1} parent=1 // pred_check
      _
    $region39: #{dgp_stack.1} parent=1 // pred_check_branch
      %619 = sbr.rel (0) target = $region41
    $region40: #{dgp_stack.1} parent=1 // pred_region
      %s621 = ssub.s32 768, 768
      %622 = vsyncadd [#allocation10], %s621
      %s623 = sshll.u32 [#allocation11], 4
      %s624 = int_to_ptr.vmem [resolvable:$true] %s623
      %629 = dma.vmem_to_hbm [thread:$0]  %s624, 768, %s6, [#allocation10], 128, 128, 8
    $region41: #{dgp_stack.1} parent=1 // pred_fallthru
      _
    // Predicated region
    $region42: #{dgp_stack.1} parent=1 // pred_check
      _
    $region43: #{dgp_stack.1} parent=1 // pred_check_branch
      %631 = sbr.rel (0) target = $region45
    $region44: #{dgp_stack.1} parent=1 // pred_region
      %632 = dma.done [#allocation4], 768
    $region45: #{dgp_stack.1} parent=1 // pred_fallthru
      _
    // Predicated region
    $region46: #{dgp_stack.1} parent=1 // pred_check
      _
    $region47: #{dgp_stack.1} parent=1 // pred_check_branch
      %634 = sbr.rel (0) target = $region49
    $region48: #{dgp_stack.1} parent=1 // pred_region
      %635 = dma.done [#allocation10], 768
    $region49: #{dgp_stack.1} parent=1 // pred_fallthru
      _
    // Predicated region
    $region50: #{dgp_stack.1} parent=1 // pred_check
      _
    $region51: #{dgp_stack.1} parent=1 // pred_check_branch
      %637 = sbr.rel (0) target = $region53
    $region52: #{dgp_stack.1} parent=1 // pred_region
      %638 = dma.done [#allocation10], 768
    $region53: #{dgp_stack.1} parent=1 // pred_fallthru
      _
    %639 = vsyncpa [#allocation3], 1
    %640 = vsyncpa [#allocation6], 1
    %641 = vsyncpa [#allocation4], 1
    %642 = vsyncpa [#allocation10], 1

</llo_original>
